<compile_context>
chip_gen: v7x
topology: tpu7x:2x2x1
jax: 0.10.0
libtpu: 0.0.40
codegen_flags: <defaults>
</compile_context>

<pallas_src>
import jax
import jax.numpy as jnp
from jax import lax
from jax.experimental import pallas as pl
from jax.experimental.pallas import tpu as pltpu


TILE_B_MAX = 4096   # batch tile cap; ~10-12 MiB VMEM double-buffered at S=32.


def _round_up(x, m):
    return (x + m - 1) // m * m


def _pick_tile_b(B):
    """Batch tile: single tile for tiny B, otherwise >=2 (even) grid steps so
    both v7x TensorCores get work, capped at TILE_B_MAX."""
    if B <= 16:
        return B                       # block == full batch dim (always legal)
    tiles = max(2, pl.cdiv(B, TILE_B_MAX))
    if tiles % 2:
        tiles += 1                     # even step count splits cleanly across 2 TCs
    return min(TILE_B_MAX, _round_up(pl.cdiv(B, tiles), 8))


# ----------------------------- Pallas kernel --------------------------------
def _forward_model_kernel(act_ref, state_ref, w1s_ref, w1a_ref, b1_ref,
                          w2_ref, b2_ref, w3_ref, b3_ref, o_ref):
    """Fused ForwardModel forward for one batch tile.

    act_ref   : (TB, 1)     int32  raw discrete action indices
    state_ref : (TB, S)     f32/bf16  state latent
    w1s_ref   : (S, H)      bf16   state half of Linear(4+S, H)
    w1a_ref   : (A_pad, H)  bf16   emb_table @ (action half of Linear(4+S, H)), row-padded
    b1_ref    : (1, H)      f32
    w2_ref    : (H, H)      bf16
    b2_ref    : (1, H)      f32
    w3_ref    : (H, S)      bf16
    b3_ref    : (1, S)      f32
    o_ref     : (TB, S)     f32 (or bf16)
    """
    cd = w1s_ref.dtype
    tb = state_ref.shape[0]
    num_actions = w1a_ref.shape[0]     # padded row count; extra rows are zero

    # Embedding lookup fused as a one-hot matmul against the pre-folded
    # (num_actions, H) action table: replaces gather + concat + half of layer 1.
    onehot = (act_ref[...] ==
              lax.broadcasted_iota(jnp.int32, (tb, num_actions), 1)).astype(cd)

    x = state_ref[...].astype(cd)
    h1 = (jnp.dot(x, w1s_ref[...], preferred_element_type=jnp.float32)
          + jnp.dot(onehot, w1a_ref[...], preferred_element_type=jnp.float32)
          + b1_ref[...])
    h1 = jnp.maximum(h1, 0.0).astype(cd)                          # ReLU

    h2 = jnp.dot(h1, w2_ref[...], preferred_element_type=jnp.float32) + b2_ref[...]
    h2 = jnp.maximum(h2, 0.0).astype(cd)                          # ReLU

    o_ref[...] = (jnp.dot(h2, w3_ref[...], preferred_element_type=jnp.float32)
                  + b3_ref[...]).astype(o_ref.dtype)


def _forward_model_call(act2d, state_latent, w1s, w1a, b1, w2, b2, w3, b3,
                        out_dtype):
    """One pallas_call covering the whole ForwardModel forward, tiled over batch."""
    B, S = state_latent.shape
    A_pad, H = w1a.shape
    tile_b = _pick_tile_b(B)
    grid = (pl.cdiv(B, tile_b),)

    def full(arr):
        return pl.BlockSpec(arr.shape, lambda i: (0,) * arr.ndim)

    weight_bytes = sum(int(a.size) * a.dtype.itemsize
                       for a in (w1s, w1a, b1, w2, b2, w3, b3))
    flops = 2 * B * ((A_pad + S) * H + H * H + H * S)
    bytes_accessed = (B * (4                                    # action indices
                           + S * state_latent.dtype.itemsize    # state read
                           + S * jnp.dtype(out_dtype).itemsize) # output write
                      + weight_bytes)

    return pl.pallas_call(
        _forward_model_kernel,
        out_shape=jax.ShapeDtypeStruct((B, S), out_dtype),
        grid_spec=pltpu.PrefetchScalarGridSpec(
            num_scalar_prefetch=0,
            grid=grid,
            in_specs=[
                pl.BlockSpec((tile_b, 1), lambda i: (i, 0)),   # action indices
                pl.BlockSpec((tile_b, S), lambda i: (i, 0)),   # state latent
                full(w1s), full(w1a), full(b1),                # weights: resident
                full(w2), full(b2),
                full(w3), full(b3),
            ],
            out_specs=pl.BlockSpec((tile_b, S), lambda i: (i, 0)),  # native-S, no pad
        ),
        compiler_params=pltpu.CompilerParams(
            dimension_semantics=("parallel",),        # megacore / dual-TC friendly
            vmem_limit_bytes=32 * 1024 * 1024),       # cover large tiles on v5e too
        cost_estimate=pl.CostEstimate(
            flops=flops, transcendentals=0, bytes_accessed=bytes_accessed),
    )(act2d, state_latent, w1s, w1a, b1, w2, b2, w3, b3)


# --------------------------- parameters / wrapper ----------------------------
def init_forward_model_params(key, num_actions, state_latent_features,
                              action_latent_features=4, hidden=128):
    """Deterministic synthetic init; shapes match the nn.Module.__init__."""
    ks = jax.random.split(key, 7)
    return {
        # nn.Embedding(num_actions, 4)
        "emb": jax.random.normal(ks[0], (num_actions, action_latent_features), jnp.float32) * 0.1,
        # nn.Linear(4 + S, 128)
        "w1": jax.random.normal(ks[1], (action_latent_features + state_latent_features, hidden), jnp.float32) * 0.05,
        "b1": jax.random.normal(ks[2], (1, hidden), jnp.float32) * 0.01,
        # nn.Linear(128, 128)
        "w2": jax.random.normal(ks[3], (hidden, hidden), jnp.float32) * 0.05,
        "b2": jax.random.normal(ks[4], (1, hidden), jnp.float32) * 0.01,
        # nn.Linear(128, S)
        "w3": jax.random.normal(ks[5], (hidden, state_latent_features), jnp.float32) * 0.05,
        "b3": jax.random.normal(ks[6], (1, state_latent_features), jnp.float32) * 0.01,
    }


def prepare_forward_model_params(params, compute_dtype=jnp.bfloat16):
    """One-time host-side transform: split/fold layer 1 and cast to bf16."""
    emb = params["emb"].astype(jnp.float32)
    num_actions, a_lat = emb.shape
    w1 = params["w1"].astype(jnp.float32)
    w1_a, w1_s = w1[:a_lat, :], w1[a_lat:, :]
    # Fold the embedding table into the action half of layer 1 (f32, cast once).
    w1_act = emb @ w1_a                                           # (num_actions, H)
    # Zero-pad action rows to a multiple of 8 for a clean sublane layout; the
    # one-hot never selects the padded rows for in-range actions.
    a_pad = _round_up(num_actions, 8)
    if a_pad != num_actions:
        w1_act = jnp.zeros((a_pad, w1_act.shape[1]), jnp.float32).at[:num_actions].set(w1_act)

    return {
        "w1_s": w1_s.astype(compute_dtype),
        "w1_act": w1_act.astype(compute_dtype),
        "b1": params["b1"].astype(jnp.float32),
        "w2": params["w2"].astype(compute_dtype),
        "b2": params["b2"].astype(jnp.float32),
        "w3": params["w3"].astype(compute_dtype),   # native S columns, no lane padding
        "b3": params["b3"].astype(jnp.float32),
    }


def forward_model_apply(prepared, state_latent, action, out_dtype=jnp.float32):
    """Full ForwardModel.forward (discrete actions), all inside one Pallas kernel.

    state_latent : (B, S) f32 or bf16 (bf16 halves the HBM read; kernel casts anyway)
    action       : (B,)   int   discrete action indices
    out_dtype    : f32 (default, matches torch) or bf16 (halves output writeback)
    returns      : (B, S) out_dtype
    """
    # TODO(synk): continuous-action branch (nn.Linear action encoder) not implemented;
    # only the discrete nn.Embedding path of the original module is covered.
    B = state_latent.shape[0]
    # NOTE: out-of-range action indices yield an all-zero one-hot (zero action
    # embedding) instead of raising like torch nn.Embedding.
    act2d = action.astype(jnp.int32).reshape(B, 1)
    return _forward_model_call(
        act2d, state_latent,
        prepared["w1_s"], prepared["w1_act"], prepared["b1"],
        prepared["w2"], prepared["b2"], prepared["w3"], prepared["b3"],
        out_dtype)


# ------------------------------------ main -----------------------------------
if __name__ == "__main__":
    B = 8                       # batch
    S = 32                      # state_latent_features
    NUM_ACTIONS = 6             # action_converter.shape[0] (discrete)

    key = jax.random.PRNGKey(0)
    k_state, k_act, k_params = jax.random.split(key, 3)

    state_latent = jax.random.normal(k_state, (B, S), jnp.float32)
    action = jax.random.randint(k_act, (B,), 0, NUM_ACTIONS, jnp.int32)

    params = init_forward_model_params(k_params, NUM_ACTIONS, S)
    prepared = prepare_forward_model_params(params)

    out = forward_model_apply(prepared, state_latent, action)
    out = jax.block_until_ready(out)
    assert out.shape == (B, S)
    assert out.dtype == jnp.float32

    # Plain-JAX f32 reference of the original (unsplit, unfused) math.
    emb = jnp.take(params["emb"], action, axis=0)
    x = jnp.concatenate([emb, state_latent], axis=-1)
    h = jnp.maximum(x @ params["w1"] + params["b1"], 0.0)
    h = jnp.maximum(h @ params["w2"] + params["b2"], 0.0)
    ref = h @ params["w3"] + params["b3"]

    err = float(jnp.max(jnp.abs(out - ref)))
    scale = float(jnp.max(jnp.abs(ref)))
    # bf16 weights/activations with f32 accumulation: allow a few % relative error.
    assert err <= 3e-2 * scale + 1e-3, (err, scale)

    print("KERNEL_OK")
</pallas_src>

<mosaic_0001>
module attributes {stable_mosaic.version = 11 : i64} {
  func.func @_forward_model_kernel(%arg0: i32, %arg1: memref<8x1xi32, #tpu.memory_space<vmem>>, %arg2: memref<8x32xf32, #tpu.memory_space<vmem>>, %arg3: memref<32x128xbf16, #tpu.memory_space<vmem>>, %arg4: memref<8x128xbf16, #tpu.memory_space<vmem>>, %arg5: memref<1x128xf32, #tpu.memory_space<vmem>>, %arg6: memref<128x128xbf16, #tpu.memory_space<vmem>>, %arg7: memref<1x128xf32, #tpu.memory_space<vmem>>, %arg8: memref<128x32xbf16, #tpu.memory_space<vmem>>, %arg9: memref<1x32xf32, #tpu.memory_space<vmem>>, %arg10: memref<8x32xf32, #tpu.memory_space<vmem>>) attributes {dimension_semantics = [#tpu.dimension_semantics<parallel>], iteration_bounds = array<i64: 1>, scalar_prefetch = 0 : i64, scratch_operands = 0 : i64, tpu.core_type = #tpu.core_type<tc>, window_params = [{transform_indices = @transform_0, window_bounds = array<i64: 8, 1>}, {transform_indices = @transform_1, window_bounds = array<i64: 8, 32>}, {pipeline_mode = #tpu.pipeline_mode<synchronous>, transform_indices = @transform_2, window_bounds = array<i64: 32, 128>}, {pipeline_mode = #tpu.pipeline_mode<synchronous>, transform_indices = @transform_3, window_bounds = array<i64: 8, 128>}, {pipeline_mode = #tpu.pipeline_mode<synchronous>, transform_indices = @transform_4, window_bounds = array<i64: 1, 128>}, {pipeline_mode = #tpu.pipeline_mode<synchronous>, transform_indices = @transform_5, window_bounds = array<i64: 128, 128>}, {pipeline_mode = #tpu.pipeline_mode<synchronous>, transform_indices = @transform_6, window_bounds = array<i64: 1, 128>}, {pipeline_mode = #tpu.pipeline_mode<synchronous>, transform_indices = @transform_7, window_bounds = array<i64: 128, 32>}, {pipeline_mode = #tpu.pipeline_mode<synchronous>, transform_indices = @transform_8, window_bounds = array<i64: 1, 32>}, {transform_indices = @transform_9, window_bounds = array<i64: 8, 32>}]} {
    %c0 = arith.constant 0 : index
    %c0_0 = arith.constant 0 : index
    %0 = vector.load %arg1[%c0, %c0_0] : memref<8x1xi32, #tpu.memory_space<vmem>>, vector<8x1xi32>
    %1 = tpu.iota {dimensions = array<i32: 1>} : vector<8x8xi32>
    %2 = vector.broadcast %0 : vector<8x1xi32> to vector<8x8xi32>
    %3 = arith.cmpi eq, %2, %1 : vector<8x8xi32>
    %4 = arith.extui %3 : vector<8x8xi1> to vector<8x8xi32>
    %5 = arith.sitofp %4 : vector<8x8xi32> to vector<8x8xf32>
    %6 = arith.truncf %5 : vector<8x8xf32> to vector<8x8xbf16>
    %c0_1 = arith.constant 0 : index
    %c0_2 = arith.constant 0 : index
    %7 = vector.load %arg2[%c0_1, %c0_2] : memref<8x32xf32, #tpu.memory_space<vmem>>, vector<8x32xf32>
    %8 = arith.truncf %7 : vector<8x32xf32> to vector<8x32xbf16>
    %c0_3 = arith.constant 0 : index
    %c0_4 = arith.constant 0 : index
    %9 = vector.load %arg3[%c0_3, %c0_4] : memref<32x128xbf16, #tpu.memory_space<vmem>>, vector<32x128xbf16>
    %cst = arith.constant dense<0.000000e+00> : vector<8x128xf32>
    %10 = tpu.matmul %8, %9, %cst {dimension_numbers = #tpu.dot_dimension_numbers<[1], [0], [0], [1], [0, 0, 1, 1], [], []>} : vector<8x32xbf16>, vector<32x128xbf16>, vector<8x128xf32> -> vector<8x128xf32>
    %c0_5 = arith.constant 0 : index
    %c0_6 = arith.constant 0 : index
    %11 = vector.load %arg4[%c0_5, %c0_6] : memref<8x128xbf16, #tpu.memory_space<vmem>>, vector<8x128xbf16>
    %cst_7 = arith.constant dense<0.000000e+00> : vector<8x128xf32>
    %12 = tpu.matmul %6, %11, %cst_7 {dimension_numbers = #tpu.dot_dimension_numbers<[1], [0], [0], [1], [0, 0, 1, 1], [], []>} : vector<8x8xbf16>, vector<8x128xbf16>, vector<8x128xf32> -> vector<8x128xf32>
    %13 = arith.addf %10, %12 : vector<8x128xf32>
    %c0_8 = arith.constant 0 : index
    %c0_9 = arith.constant 0 : index
    %14 = vector.load %arg5[%c0_8, %c0_9] : memref<1x128xf32, #tpu.memory_space<vmem>>, vector<1x128xf32>
    %15 = vector.broadcast %14 : vector<1x128xf32> to vector<8x128xf32>
    %16 = arith.addf %13, %15 : vector<8x128xf32>
    %cst_10 = arith.constant 0.000000e+00 : f32
    %17 = vector.broadcast %cst_10 : f32 to vector<8x128xf32>
    %18 = arith.maximumf %16, %17 : vector<8x128xf32>
    %19 = arith.truncf %18 : vector<8x128xf32> to vector<8x128xbf16>
    %c0_11 = arith.constant 0 : index
    %c0_12 = arith.constant 0 : index
    %20 = vector.load %arg6[%c0_11, %c0_12] : memref<128x128xbf16, #tpu.memory_space<vmem>>, vector<128x128xbf16>
    %cst_13 = arith.constant dense<0.000000e+00> : vector<8x128xf32>
    %21 = tpu.matmul %19, %20, %cst_13 {dimension_numbers = #tpu.dot_dimension_numbers<[1], [0], [0], [1], [0, 0, 1, 1], [], []>} : vector<8x128xbf16>, vector<128x128xbf16>, vector<8x128xf32> -> vector<8x128xf32>
    %c0_14 = arith.constant 0 : index
    %c0_15 = arith.constant 0 : index
    %22 = vector.load %arg7[%c0_14, %c0_15] : memref<1x128xf32, #tpu.memory_space<vmem>>, vector<1x128xf32>
    %23 = vector.broadcast %22 : vector<1x128xf32> to vector<8x128xf32>
    %24 = arith.addf %21, %23 : vector<8x128xf32>
    %cst_16 = arith.constant 0.000000e+00 : f32
    %25 = vector.broadcast %cst_16 : f32 to vector<8x128xf32>
    %26 = arith.maximumf %24, %25 : vector<8x128xf32>
    %27 = arith.truncf %26 : vector<8x128xf32> to vector<8x128xbf16>
    %c0_17 = arith.constant 0 : index
    %c0_18 = arith.constant 0 : index
    %28 = vector.load %arg8[%c0_17, %c0_18] : memref<128x32xbf16, #tpu.memory_space<vmem>>, vector<128x32xbf16>
    %cst_19 = arith.constant dense<0.000000e+00> : vector<8x32xf32>
    %29 = tpu.matmul %27, %28, %cst_19 {dimension_numbers = #tpu.dot_dimension_numbers<[1], [0], [0], [1], [0, 0, 1, 1], [], []>} : vector<8x128xbf16>, vector<128x32xbf16>, vector<8x32xf32> -> vector<8x32xf32>
    %c0_20 = arith.constant 0 : index
    %c0_21 = arith.constant 0 : index
    %30 = vector.load %arg9[%c0_20, %c0_21] : memref<1x32xf32, #tpu.memory_space<vmem>>, vector<1x32xf32>
    %31 = vector.broadcast %30 : vector<1x32xf32> to vector<8x32xf32>
    %32 = arith.addf %29, %31 : vector<8x32xf32>
    %c0_22 = arith.constant 0 : index
    %c0_23 = arith.constant 0 : index
    %33 = vector.load %arg10[%c0_22, %c0_23] : memref<8x32xf32, #tpu.memory_space<vmem>>, vector<8x32xf32>
    tpu.vector_store %arg10[%c0_22, %c0_23], %32 {strides = array<i32>} : memref<8x32xf32, #tpu.memory_space<vmem>>, vector<8x32xf32>,
    return
  }
  func.func @transform_0(%arg0: i32) -> (i32, i32) {
    %c0_i32 = arith.constant 0 : i32
    %c0_i32_0 = arith.constant 0 : i32
    return %arg0, %c0_i32 : i32, i32
  }
  func.func @transform_1(%arg0: i32) -> (i32, i32) {
    %c0_i32 = arith.constant 0 : i32
    %c0_i32_0 = arith.constant 0 : i32
    return %arg0, %c0_i32 : i32, i32
  }
  func.func @transform_2(%arg0: i32) -> (i32, i32) {
    %c0_i32 = arith.constant 0 : i32
    %c0_i32_0 = arith.constant 0 : i32
    %c0_i32_1 = arith.constant 0 : i32
    return %c0_i32, %c0_i32_0 : i32, i32
  }
  func.func @transform_3(%arg0: i32) -> (i32, i32) {
    %c0_i32 = arith.constant 0 : i32
    %c0_i32_0 = arith.constant 0 : i32
    %c0_i32_1 = arith.constant 0 : i32
    return %c0_i32, %c0_i32_0 : i32, i32
  }
  func.func @transform_4(%arg0: i32) -> (i32, i32) {
    %c0_i32 = arith.constant 0 : i32
    %c0_i32_0 = arith.constant 0 : i32
    %c0_i32_1 = arith.constant 0 : i32
    return %c0_i32, %c0_i32_0 : i32, i32
  }
  func.func @transform_5(%arg0: i32) -> (i32, i32) {
    %c0_i32 = arith.constant 0 : i32
    %c0_i32_0 = arith.constant 0 : i32
    %c0_i32_1 = arith.constant 0 : i32
    return %c0_i32, %c0_i32_0 : i32, i32
  }
  func.func @transform_6(%arg0: i32) -> (i32, i32) {
    %c0_i32 = arith.constant 0 : i32
    %c0_i32_0 = arith.constant 0 : i32
    %c0_i32_1 = arith.constant 0 : i32
    return %c0_i32, %c0_i32_0 : i32, i32
  }
  func.func @transform_7(%arg0: i32) -> (i32, i32) {
    %c0_i32 = arith.constant 0 : i32
    %c0_i32_0 = arith.constant 0 : i32
    %c0_i32_1 = arith.constant 0 : i32
    return %c0_i32, %c0_i32_0 : i32, i32
  }
  func.func @transform_8(%arg0: i32) -> (i32, i32) {
    %c0_i32 = arith.constant 0 : i32
    %c0_i32_0 = arith.constant 0 : i32
    %c0_i32_1 = arith.constant 0 : i32
    return %c0_i32, %c0_i32_0 : i32, i32
  }
  func.func @transform_9(%arg0: i32) -> (i32, i32) {
    %c0_i32 = arith.constant 0 : i32
    %c0_i32_0 = arith.constant 0 : i32
    return %arg0, %c0_i32 : i32, i32
  }
}

</mosaic_0001>

<llo_original>
// kernel: tpu_custom_call.1
$region0: #{tpu_custom_call.1}
  #allocation0 [shape = 'u32[]', space=smem, size = 0x4, offset = 0x4, fixed_abs, tag = 'smem constant byte address 0x4 - core index']
  #allocation1 [shape = 'u32[144,128]{1,0:T(1,128)}', space=vmem, size = 0x12000, scoped, tag = 'internal scratch']
  %s0 = inlined_call_operand.vmem [shape: s32[8,1], index: 0, kind: input, shape index: {}]
  %s1 = inlined_call_operand.vmem [shape: f32[8,32], index: 1, kind: input, shape index: {}]
  %s2 = inlined_call_operand.vmem [shape: bf16[32,128], index: 2, kind: input, shape index: {}]
  %s3 = inlined_call_operand.vmem [shape: bf16[8,128], index: 3, kind: input, shape index: {}]
  %s4 = inlined_call_operand.vmem [shape: f32[1,128], index: 4, kind: input, shape index: {}]
  %s5 = inlined_call_operand.vmem [shape: bf16[128,128], index: 5, kind: input, shape index: {}]
  %s6 = inlined_call_operand.vmem [shape: f32[1,128], index: 6, kind: input, shape index: {}]
  %s7 = inlined_call_operand.vmem [shape: bf16[128,32], index: 7, kind: input, shape index: {}]
  %s8 = inlined_call_operand.vmem [shape: f32[1,32], index: 8, kind: input, shape index: {}]
  %s9 = inlined_call_operand.hbm [shape: f32[8,32], index: 9, kind: output, shape index: {}]
  %s10 = sld [smem:[#allocation0]]
  $region46: #{tpu_custom_call.1} parent=0
    _
  %s12 = ssub.s32 1, %s10
  %s13 = scalar_select 0, %s12, %s10
  $region1: #{tpu_custom_call.1} parent=0
    #allocation2 [shape = 'u8[4096]{0}', space=vmem, size = 0x1000, scoped, tag = 'output window, operand 0, single buffered']
    #allocation3 [shape = 's32[1]{0}', space=sflag, size = 0x4, scoped, tag = 'scoped memory for tpu_custom_call.1']
    %14 = vsyncpa [#allocation3], 0
    // Predicated region
    $region2: #{tpu_custom_call.1} parent=1 // pred_check
      _
    $region3: #{tpu_custom_call.1} parent=1 // pred_check_branch
      %16 = sbr.rel (0) target = $region5
    $region4: #{tpu_custom_call.1} parent=1 // pred_region
      _
    $region5: #{tpu_custom_call.1} parent=1 // pred_fallthru
      _
    // Predicated region
    $region6: #{tpu_custom_call.1} parent=1 // pred_check
      _
    $region7: #{tpu_custom_call.1} parent=1 // pred_check_branch
      %18 = sbr.rel (0) target = $region9
    $region8: #{tpu_custom_call.1} parent=1 // pred_region
      _
    $region9: #{tpu_custom_call.1} parent=1 // pred_fallthru
      _
    // Predicated region
    $region10: #{tpu_custom_call.1} parent=1 // pred_check
      _
    $region11: #{tpu_custom_call.1} parent=1 // pred_check_branch
      %20 = sbr.rel (0) target = $region13
    $region12: #{tpu_custom_call.1} parent=1 // pred_region
      _
    $region13: #{tpu_custom_call.1} parent=1 // pred_fallthru
      _
    // Predicated region
    $region14: #{tpu_custom_call.1} parent=1 // pred_check
      _
    $region15: #{tpu_custom_call.1} parent=1 // pred_check_branch
      %22 = sbr.rel (0) target = $region17
    $region16: #{tpu_custom_call.1} parent=1 // pred_region
      _
    $region17: #{tpu_custom_call.1} parent=1 // pred_fallthru
      _
    // Predicated region
    $region18: #{tpu_custom_call.1} parent=1 // pred_check
      _
    $region19: #{tpu_custom_call.1} parent=1 // pred_check_branch
      %24 = sbr.rel (0) target = $region21
    $region20: #{tpu_custom_call.1} parent=1 // pred_region
      _
    $region21: #{tpu_custom_call.1} parent=1 // pred_fallthru
      _
    // Predicated region
    $region22: #{tpu_custom_call.1} parent=1 // pred_check
      _
    $region23: #{tpu_custom_call.1} parent=1 // pred_check_branch
      %26 = sbr.rel (0) target = $region25
    $region24: #{tpu_custom_call.1} parent=1 // pred_region
      _
    $region25: #{tpu_custom_call.1} parent=1 // pred_fallthru
      _
    // Predicated region
    $region26: #{tpu_custom_call.1} parent=1 // pred_check
      _
    $region27: #{tpu_custom_call.1} parent=1 // pred_check_branch
      %28 = sbr.rel (0) target = $region29
    $region28: #{tpu_custom_call.1} parent=1 // pred_region
      _
    $region29: #{tpu_custom_call.1} parent=1 // pred_fallthru
      _
    // Predicated region
    $region30: #{tpu_custom_call.1} parent=1 // pred_check
      _
    $region31: #{tpu_custom_call.1} parent=1 // pred_check_branch
      %30 = sbr.rel (0) target = $region33
    $region32: #{tpu_custom_call.1} parent=1 // pred_region
      _
    $region33: #{tpu_custom_call.1} parent=1 // pred_fallthru
      _
    // Predicated region
    $region34: #{tpu_custom_call.1} parent=1 // pred_check
      _
    $region35: #{tpu_custom_call.1} parent=1 // pred_check_branch
      %32 = sbr.rel (0) target = $region37
    $region36: #{tpu_custom_call.1} parent=1 // pred_region
      _
    $region37: #{tpu_custom_call.1} parent=1 // pred_fallthru
      _
    %v34 = vld [vmem:[%s0] sm:$0xff]
    %v35 = vlaneseq
    %v36 = vand.u32 %v35, 127
    %37 = vset.pattern.permute.xlu0 0
    %38 = vperm.xlu0 %37, %v34
    %v39 = vpop.permute.xlu0 %38
    %vm40 = vcmp.eq.s32.totalorder %v39, %v36
    %v41 = vsel %vm40, 1, 0
    %v42 = vcvt.s32.f32 %v41
    %v43 = vpack.c.bf16 %v42, %v42
    %v44 = vld [vmem:[%s1] sm:$0xff]
    %v45 = vpack.c.bf16 %v44, %v44
    %v46 = vld [vmem:[%s2] sm:$0xf]
    %v47 = vld [vmem:[%s2 + $0x4] sm:$0xf]
    %v48 = vld [vmem:[%s2 + $0x8] sm:$0xf]
    %v49 = vld [vmem:[%s2 + $0xc] sm:$0xf]
    %v50 = vld [vmem:[%s3] sm:$0xf]
    %vm51 = vcmask 64512
    %v53 = vsel %vm51, %v43, 0
    %vm55 = vcmask 1043456
    %v57 = vsel %vm55, %v50, 0
    %59 = vmatprep.subr.bf16.mxu0 0
    %60 = vmatpush1.bf16.msra.mxu0 %v57
    %61 = vmatprep.subr.bf16.mxu0 0
    %62 = vmatpush1.bf16.msra.mxu0 0
    %63 = vmatprep.subr.bf16.mxu0 0
    %64 = vmatpush1.bf16.msra.mxu0 0
    %65 = vmatprep.subr.bf16.mxu0 0
    %66 = vmatpush1.bf16.msra.mxu0 0
    %67 = vmatprep.subr.bf16.mxu0 0
    %68 = vmatpush1.bf16.msra.mxu0 0
    %69 = vmatprep.subr.bf16.mxu0 0
    %70 = vmatpush1.bf16.msra.mxu0 0
    %71 = vmatprep.subr.bf16.mxu0 0
    %72 = vmatpush1.bf16.msra.mxu0 0
    %73 = vmatprep.subr.bf16.mxu0 0
    %74 = vmatpush1.bf16.msra.mxu0 0
    %75 = vmatprep.subr.bf16.mxu0 0
    %76 = vmatpush1.bf16.msra.mxu0 0
    %77 = vmatprep.subr.bf16.mxu0 0
    %78 = vmatpush1.bf16.msra.mxu0 0
    %79 = vmatprep.subr.bf16.mxu0 0
    %80 = vmatpush1.bf16.msra.mxu0 0
    %81 = vmatprep.subr.bf16.mxu0 0
    %82 = vmatpush1.bf16.msra.mxu0 0
    %83 = vmatprep.subr.bf16.mxu0 0
    %84 = vmatpush1.bf16.msra.mxu0 0
    %85 = vmatprep.subr.bf16.mxu0 0
    %86 = vmatpush1.bf16.msra.mxu0 0
    %87 = vmatprep.subr.bf16.mxu0 0
    %88 = vmatpush1.bf16.msra.mxu0 0
    %89 = vmatprep.subr.bf16.mxu0 0
    %90 = vmatpush1.bf16.msra.mxu0 0
    %91 = vmatprep.mubr.bf16.mxu0 0
    %92 = vmatmul.mubr.bf16.gmra.mrb[0].mxu0 %v53
    %v93 = vpop.f32.mrb[0].mxu0
    %v94 = vadd.f32 0.0, %v93
    %v95 = vpop.f32.mrb[0].mxu0
    %v96 = vpop.f32.mrb[0].mxu0
    %v97 = vpop.f32.mrb[0].mxu0
    %98 = vdwg.mxu0
    %v103 = vunpack.c.l.b16 %v46
    %v104 = vunpack.c.l.b16 %v47
    %v105 = vunpack.c.l.b16 %v48
    %v106 = vunpack.c.l.b16 %v49
    %v107 = vpack.c.b16 %v104, %v103
    %v108 = vpack.c.b16 %v106, %v105
    %vm111 = vcmask 261120
    %v113 = vsel %vm111, %v45, 0
    %115 = vmatprep.subr.bf16.mxu0 0
    %116 = vmatpush1.bf16.msra.mxu0 %v107
    %117 = vmatprep.subr.bf16.mxu0 0
    %118 = vmatpush1.bf16.msra.mxu0 %v108
    %119 = vmatprep.subr.bf16.mxu0 0
    %120 = vmatpush1.bf16.msra.mxu0 0
    %121 = vmatprep.subr.bf16.mxu0 0
    %122 = vmatpush1.bf16.msra.mxu0 0
    %123 = vmatprep.subr.bf16.mxu0 0
    %124 = vmatpush1.bf16.msra.mxu0 0
    %125 = vmatprep.subr.bf16.mxu0 0
    %126 = vmatpush1.bf16.msra.mxu0 0
    %127 = vmatprep.subr.bf16.mxu0 0
    %128 = vmatpush1.bf16.msra.mxu0 0
    %129 = vmatprep.subr.bf16.mxu0 0
    %130 = vmatpush1.bf16.msra.mxu0 0
    %131 = vmatprep.subr.bf16.mxu0 0
    %132 = vmatpush1.bf16.msra.mxu0 0
    %133 = vmatprep.subr.bf16.mxu0 0
    %134 = vmatpush1.bf16.msra.mxu0 0
    %135 = vmatprep.subr.bf16.mxu0 0
    %136 = vmatpush1.bf16.msra.mxu0 0
    %137 = vmatprep.subr.bf16.mxu0 0
    %138 = vmatpush1.bf16.msra.mxu0 0
    %139 = vmatprep.subr.bf16.mxu0 0
    %140 = vmatpush1.bf16.msra.mxu0 0
    %141 = vmatprep.subr.bf16.mxu0 0
    %142 = vmatpush1.bf16.msra.mxu0 0
    %143 = vmatprep.subr.bf16.mxu0 0
    %144 = vmatpush1.bf16.msra.mxu0 0
    %145 = vmatprep.subr.bf16.mxu0 0
    %146 = vmatpush1.bf16.msra.mxu0 0
    %147 = vmatprep.mubr.bf16.mxu0 0
    %148 = vmatmul.mubr.bf16.gmra.mrb[0].mxu0 %v113
    %v149 = vpop.f32.mrb[0].mxu0
    %v150 = vadd.f32 %v94, %v149
    %v151 = vpop.f32.mrb[0].mxu0
    %v152 = vpop.f32.mrb[0].mxu0
    %v153 = vpop.f32.mrb[0].mxu0
    %154 = vdwg.mxu0
    %v155 = vld [vmem:[%s4] sm:$0x1]
    %v157 = vlaneseq
    %v158 = vshrl.u32 %v157, 7
    %v159 = vsub.s32 0, %v158
    %v160 = vrot.slane %v155, %v159
    %v162 = vadd.f32 %v150, %v160
    %v163 = vmax.f32 %v162, 0.0
    %v164 = vpack.c.bf16 %v163, %v163
    %v165 = vld [vmem:[%s5] sm:$0xf]
    %v166 = vld [vmem:[%s5 + $0x4] sm:$0xf]
    %v167 = vld [vmem:[%s5 + $0x8] sm:$0xf]
    %v168 = vld [vmem:[%s5 + $0xc] sm:$0xf]
    %v169 = vld [vmem:[%s5 + $0x10] sm:$0xf]
    %v170 = vld [vmem:[%s5 + $0x14] sm:$0xf]
    %v171 = vld [vmem:[%s5 + $0x18] sm:$0xf]
    %v172 = vld [vmem:[%s5 + $0x1c] sm:$0xf]
    %v173 = vld [vmem:[%s5 + $0x20] sm:$0xf]
    %v174 = vld [vmem:[%s5 + $0x24] sm:$0xf]
    %v175 = vld [vmem:[%s5 + $0x28] sm:$0xf]
    %v176 = vld [vmem:[%s5 + $0x2c] sm:$0xf]
    %v177 = vld [vmem:[%s5 + $0x30] sm:$0xf]
    %v178 = vld [vmem:[%s5 + $0x34] sm:$0xf]
    %v179 = vld [vmem:[%s5 + $0x38] sm:$0xf]
    %v180 = vld [vmem:[%s5 + $0x3c] sm:$0xf]
    %v181 = vld [vmem:[%s6] sm:$0x1]
    %v183 = vlaneseq
    %v184 = vshrl.u32 %v183, 7
    %v185 = vsub.s32 0, %v184
    %v186 = vrot.slane %v181, %v185
    %v204 = vunpack.c.l.b16 %v165
    %v205 = vunpack.c.l.b16 %v166
    %v206 = vunpack.c.l.b16 %v167
    %v207 = vunpack.c.l.b16 %v168
    %v208 = vunpack.c.l.b16 %v169
    %v209 = vunpack.c.l.b16 %v170
    %v210 = vunpack.c.l.b16 %v171
    %v211 = vunpack.c.l.b16 %v172
    %v212 = vunpack.c.l.b16 %v173
    %v213 = vunpack.c.l.b16 %v174
    %v214 = vunpack.c.l.b16 %v175
    %v215 = vunpack.c.l.b16 %v176
    %v216 = vunpack.c.l.b16 %v177
    %v217 = vunpack.c.l.b16 %v178
    %v218 = vunpack.c.l.b16 %v179
    %v219 = vunpack.c.l.b16 %v180
    %v220 = vpack.c.b16 %v205, %v204
    %v221 = vpack.c.b16 %v207, %v206
    %v222 = vpack.c.b16 %v209, %v208
    %v223 = vpack.c.b16 %v211, %v210
    %v224 = vpack.c.b16 %v213, %v212
    %v225 = vpack.c.b16 %v215, %v214
    %v226 = vpack.c.b16 %v217, %v216
    %v227 = vpack.c.b16 %v219, %v218
    %236 = vmatprep.subr.bf16.mxu0 0
    %237 = vmatpush1.bf16.msra.mxu0 %v220
    %238 = vmatprep.subr.bf16.mxu0 0
    %239 = vmatpush1.bf16.msra.mxu0 %v221
    %240 = vmatprep.subr.bf16.mxu0 0
    %241 = vmatpush1.bf16.msra.mxu0 %v222
    %242 = vmatprep.subr.bf16.mxu0 0
    %243 = vmatpush1.bf16.msra.mxu0 %v223
    %244 = vmatprep.subr.bf16.mxu0 0
    %245 = vmatpush1.bf16.msra.mxu0 %v224
    %246 = vmatprep.subr.bf16.mxu0 0
    %247 = vmatpush1.bf16.msra.mxu0 %v225
    %248 = vmatprep.subr.bf16.mxu0 0
    %249 = vmatpush1.bf16.msra.mxu0 %v226
    %250 = vmatprep.subr.bf16.mxu0 0
    %251 = vmatpush1.bf16.msra.mxu0 %v227
    %252 = vmatprep.subr.bf16.mxu0 0
    %253 = vmatpush1.bf16.msra.mxu0 0
    %254 = vmatprep.subr.bf16.mxu0 0
    %255 = vmatpush1.bf16.msra.mxu0 0
    %256 = vmatprep.subr.bf16.mxu0 0
    %257 = vmatpush1.bf16.msra.mxu0 0
    %258 = vmatprep.subr.bf16.mxu0 0
    %259 = vmatpush1.bf16.msra.mxu0 0
    %260 = vmatprep.subr.bf16.mxu0 0
    %261 = vmatpush1.bf16.msra.mxu0 0
    %262 = vmatprep.subr.bf16.mxu0 0
    %263 = vmatpush1.bf16.msra.mxu0 0
    %264 = vmatprep.subr.bf16.mxu0 0
    %265 = vmatpush1.bf16.msra.mxu0 0
    %266 = vmatprep.subr.bf16.mxu0 0
    %267 = vmatpush1.bf16.msra.mxu0 0
    %268 = vmatprep.mubr.bf16.mxu0 0
    %269 = vmatmul.mubr.bf16.gmra.mrb[0].mxu0 %v164
    %v270 = vpop.f32.mrb[0].mxu0
    %v271 = vadd.f32 %v186, %v270
    %v272 = vpop.f32.mrb[0].mxu0
    %v273 = vpop.f32.mrb[0].mxu0
    %v274 = vpop.f32.mrb[0].mxu0
    %275 = vdwg.mxu0
    %v276 = vmax.f32 %v271, 0.0
    %v277 = vpack.c.bf16 %v276, %v276
    %v278 = vld [vmem:[%s7] sm:$0xf]
    %v279 = vld [vmem:[%s7 + $0x4] sm:$0xf]
    %v280 = vld [vmem:[%s7 + $0x8] sm:$0xf]
    %v281 = vld [vmem:[%s7 + $0xc] sm:$0xf]
    %v282 = vld [vmem:[%s7 + $0x10] sm:$0xf]
    %v283 = vld [vmem:[%s7 + $0x14] sm:$0xf]
    %v284 = vld [vmem:[%s7 + $0x18] sm:$0xf]
    %v285 = vld [vmem:[%s7 + $0x1c] sm:$0xf]
    %v286 = vld [vmem:[%s7 + $0x20] sm:$0xf]
    %v287 = vld [vmem:[%s7 + $0x24] sm:$0xf]
    %v288 = vld [vmem:[%s7 + $0x28] sm:$0xf]
    %v289 = vld [vmem:[%s7 + $0x2c] sm:$0xf]
    %v290 = vld [vmem:[%s7 + $0x30] sm:$0xf]
    %v291 = vld [vmem:[%s7 + $0x34] sm:$0xf]
    %v292 = vld [vmem:[%s7 + $0x38] sm:$0xf]
    %v293 = vld [vmem:[%s7 + $0x3c] sm:$0xf]
    %v294 = vld [vmem:[%s8] sm:$0x1]
    %v296 = vlaneseq
    %v297 = vshrl.u32 %v296, 7
    %v298 = vsub.s32 0, %v297
    %v299 = vrot.slane %v294, %v298
    %v317 = vunpack.c.l.b16 %v278
    %v318 = vunpack.c.l.b16 %v279
    %v319 = vunpack.c.l.b16 %v280
    %v320 = vunpack.c.l.b16 %v281
    %v321 = vunpack.c.l.b16 %v282
    %v322 = vunpack.c.l.b16 %v283
    %v323 = vunpack.c.l.b16 %v284
    %v324 = vunpack.c.l.b16 %v285
    %v325 = vunpack.c.l.b16 %v286
    %v326 = vunpack.c.l.b16 %v287
    %v327 = vunpack.c.l.b16 %v288
    %v328 = vunpack.c.l.b16 %v289
    %v329 = vunpack.c.l.b16 %v290
    %v330 = vunpack.c.l.b16 %v291
    %v331 = vunpack.c.l.b16 %v292
    %v332 = vunpack.c.l.b16 %v293
    %v333 = vpack.c.b16 %v318, %v317
    %v334 = vpack.c.b16 %v320, %v319
    %v335 = vpack.c.b16 %v322, %v321
    %v336 = vpack.c.b16 %v324, %v323
    %v337 = vpack.c.b16 %v326, %v325
    %v338 = vpack.c.b16 %v328, %v327
    %v339 = vpack.c.b16 %v330, %v329
    %v340 = vpack.c.b16 %v332, %v331
    %349 = vmatprep.subr.bf16.mxu0 0
    %350 = vmatpush1.bf16.msra.mxu0 %v333
    %351 = vmatprep.subr.bf16.mxu0 0
    %352 = vmatpush1.bf16.msra.mxu0 %v334
    %353 = vmatprep.subr.bf16.mxu0 0
    %354 = vmatpush1.bf16.msra.mxu0 %v335
    %355 = vmatprep.subr.bf16.mxu0 0
    %356 = vmatpush1.bf16.msra.mxu0 %v336
    %357 = vmatprep.subr.bf16.mxu0 0
    %358 = vmatpush1.bf16.msra.mxu0 %v337
    %359 = vmatprep.subr.bf16.mxu0 0
    %360 = vmatpush1.bf16.msra.mxu0 %v338
    %361 = vmatprep.subr.bf16.mxu0 0
    %362 = vmatpush1.bf16.msra.mxu0 %v339
    %363 = vmatprep.subr.bf16.mxu0 0
    %364 = vmatpush1.bf16.msra.mxu0 %v340
    %365 = vmatprep.subr.bf16.mxu0 0
    %366 = vmatpush1.bf16.msra.mxu0 0
    %367 = vmatprep.subr.bf16.mxu0 0
    %368 = vmatpush1.bf16.msra.mxu0 0
    %369 = vmatprep.subr.bf16.mxu0 0
    %370 = vmatpush1.bf16.msra.mxu0 0
    %371 = vmatprep.subr.bf16.mxu0 0
    %372 = vmatpush1.bf16.msra.mxu0 0
    %373 = vmatprep.subr.bf16.mxu0 0
    %374 = vmatpush1.bf16.msra.mxu0 0
    %375 = vmatprep.subr.bf16.mxu0 0
    %376 = vmatpush1.bf16.msra.mxu0 0
    %377 = vmatprep.subr.bf16.mxu0 0
    %378 = vmatpush1.bf16.msra.mxu0 0
    %379 = vmatprep.subr.bf16.mxu0 0
    %380 = vmatpush1.bf16.msra.mxu0 0
    %381 = vmatprep.mubr.bf16.mxu0 0
    %382 = vmatmul.mubr.bf16.gmra.mrb[0].mxu0 %v277
    %v383 = vpop.f32.mrb[0].mxu0
    %v384 = vadd.f32 %v299, %v383
    %v385 = vpop.f32.mrb[0].mxu0
    %v386 = vpop.f32.mrb[0].mxu0
    %v387 = vpop.f32.mrb[0].mxu0
    %388 = vdwg.mxu0
    %389 = vst.msk [vmem:[#allocation2] sm:$0xff] %vm111, %v384
    // Predicated region
    $region38: #{tpu_custom_call.1} parent=1 // pred_check
      _
    $region39: #{tpu_custom_call.1} parent=1 // pred_check_branch
      %391 = sbr.rel (0) target = $region41
    $region40: #{tpu_custom_call.1} parent=1 // pred_region
      %s393 = ssub.s32 128, 128
      %394 = vsyncadd [#allocation3], %s393
      %s396 = sshll.u32 [#allocation2], 4
      %s397 = int_to_ptr.vmem [resolvable:$true] %s396
      %399 = dma.vmem_to_hbm [thread:$0]  %s397, 128, %s9, [#allocation3]
    $region41: #{tpu_custom_call.1} parent=1 // pred_fallthru
      _
    // Predicated region
    $region42: #{tpu_custom_call.1} parent=1 // pred_check
      _
    $region43: #{tpu_custom_call.1} parent=1 // pred_check_branch
      %401 = sbr.rel (0) target = $region45
    $region44: #{tpu_custom_call.1} parent=1 // pred_region
      %402 = dma.done [#allocation3], 128
    $region45: #{tpu_custom_call.1} parent=1 // pred_fallthru
      _
    %403 = vsyncpa [#allocation3], 1

</llo_original>
